<compile_context>
chip_gen: v5e
topology: v5e:2x2
jax: 0.10.0
libtpu: 0.0.40
codegen_flags: <defaults>
</compile_context>

<pallas_src>
import functools

import jax
import jax.numpy as jnp
from jax.experimental import pallas as pl
from jax.experimental.pallas import tpu as pltpu


def _channel_attention_kernel(x_ref, w1e_ref, w2e_ref, out_ref, *, bblk, inv_area):
    # x_ref  : (bblk, C*P, L)   pooling windows contiguous along the last (lane) axis
    # w1e_ref: (C*P, hidden*P)  block-diagonal expansion of fc1 (1x1 conv) weight
    # w2e_ref: (hidden*P, C*P)  block-diagonal expansion of fc2 (1x1 conv) weight
    # out_ref: (bblk, 1, C*P)   lane-dense sigmoid(channel attention)
    x = x_ref[...]                                    # (bblk, CP, L)

    # Adaptive pooling: single vectorized reductions over the lane axis.
    avg = jnp.sum(x, axis=-1) * inv_area              # (bblk, CP)
    mx = jnp.max(x, axis=-1)                          # (bblk, CP)

    # Fuse avg-branch, max-branch and all batch rows into one matmul pair.
    rows = jnp.concatenate([avg, mx], axis=0)         # (2*bblk, CP)
    h = jnp.dot(rows, w1e_ref[...], preferred_element_type=jnp.float32)  # (2*bblk, HP)
    h = jnp.maximum(h, 0.0)                                               # ReLU
    y = jnp.dot(h, w2e_ref[...], preferred_element_type=jnp.float32)      # (2*bblk, CP)

    # ReLU is nonlinear, so the two branches are added only AFTER fc2.
    out = jax.nn.sigmoid(y[:bblk] + y[bblk:])         # (bblk, CP)
    out_ref[...] = out[:, None, :].astype(out_ref.dtype)


def _expand_weight(w, P):
    # w: (out_ch, in_ch) 1x1-conv weight applied independently to P pooled pixels.
    # Returns W of shape (in_ch*P, out_ch*P) with W[c*P+q, o*P+p] = w[o, c] * delta(p, q)
    # so that rows[N, in_ch*P] @ W == the per-pixel 1x1 conv (pixel-minor flattening).
    out_ch, in_ch = w.shape
    eye = jnp.eye(P, dtype=w.dtype)
    return jnp.einsum("oc,pq->cqop", w, eye).reshape(in_ch * P, out_ch * P)


def _choose_batch_block(B, C, P, L):
    # VMEM footprint of one input block per batch element (padded to (8,128) tiles).
    bytes_per_b = ((C * P + 7) // 8) * 8 * ((L + 127) // 128) * 128 * 4
    budget = 8 << 20  # per buffer; the pipeline double-buffers on top of this
    cap = max(1, budget // max(bytes_per_b, 1))
    cap = min(cap, 16, B)
    bblk = 1
    for d in range(1, B + 1):            # largest divisor of B not exceeding cap
        if B % d == 0 and d <= cap:
            bblk = d
    if B > 1 and B // bblk < 2:          # keep >=2 grid steps (v7x: 2 TensorCores)
        for d in range(bblk - 1, 0, -1):
            if B % d == 0:
                bblk = d
                break
    return bblk


def channel_attention(x, w1, w2, outsize):
    B, C, H, W = x.shape
    hidden = w1.shape[0]
    assert H % outsize == 0 and W % outsize == 0, "adaptive pool: even bins only"
    bh, bw = H // outsize, W // outsize
    P = outsize * outsize
    L = bh * bw
    CP, HP = C * P, hidden * P

    # Wrapper-side layout plumbing: pooling window contiguous on the last axis,
    # (channel, pixel) flattened so the kernel is lane-dense end to end.
    xt = (
        x.reshape(B, C, outsize, bh, outsize, bw)
        .transpose(0, 1, 2, 4, 3, 5)
        .reshape(B, CP, L)
    )
    w1e = _expand_weight(w1, P)   # (CP, HP)
    w2e = _expand_weight(w2, P)   # (HP, CP)

    bblk = _choose_batch_block(B, C, P, L)
    grid = (B // bblk,)

    kernel = functools.partial(
        _channel_attention_kernel, bblk=bblk, inv_area=1.0 / float(L)
    )
    out = pl.pallas_call(
        kernel,
        out_shape=jax.ShapeDtypeStruct((B, 1, CP), x.dtype),
        grid=grid,
        in_specs=[
            pl.BlockSpec((bblk, CP, L), lambda b: (b, 0, 0)),
            pl.BlockSpec((CP, HP), lambda b: (0, 0)),   # constant index -> no re-DMA
            pl.BlockSpec((HP, CP), lambda b: (0, 0)),   # constant index -> no re-DMA
        ],
        out_specs=pl.BlockSpec((bblk, 1, CP), lambda b: (b, 0, 0)),
        compiler_params=pltpu.CompilerParams(
            dimension_semantics=("parallel",),
        ),
    )(xt, w1e, w2e)
    return out.reshape(B, C, outsize, outsize)


def channel_attention_ref(x, w1, w2, outsize):
    # Pure-JAX reference of the PyTorch forward, for validation.
    B, C, H, W = x.shape
    bh, bw = H // outsize, W // outsize
    xr = x.reshape(B, C, outsize, bh, outsize, bw)
    avg = xr.mean(axis=(3, 5))            # (B, C, o, o)
    mxp = xr.max(axis=(3, 5))             # (B, C, o, o)

    def mlp(v):
        h = jnp.einsum("oc,bchw->bohw", w1, v)
        h = jnp.maximum(h, 0.0)
        return jnp.einsum("co,bohw->bchw", w2, h)

    return jax.nn.sigmoid(mlp(avg) + mlp(mxp))


if __name__ == "__main__":
    # Module config: in_planes=32, ratio=4 -> hidden=8, outsize=2 (P=4, C*P=128).
    B, C, H, W = 2, 32, 16, 16
    ratio = 4
    hidden = C // ratio
    outsize = 2

    key = jax.random.PRNGKey(0)
    kx, k1, k2 = jax.random.split(key, 3)
    x = jax.random.normal(kx, (B, C, H, W), dtype=jnp.float32)
    # Conv2d(in_planes, in_planes//ratio, 1, bias=False) -> weight (hidden, C, 1, 1)
    w1 = jax.random.normal(k1, (hidden, C), dtype=jnp.float32) * 0.1
    # Conv2d(in_planes//ratio, in_planes, 1, bias=False) -> weight (C, hidden, 1, 1)
    w2 = jax.random.normal(k2, (C, hidden), dtype=jnp.float32) * 0.1

    out = channel_attention(x, w1, w2, outsize)
    out = jax.block_until_ready(out)

    ref = channel_attention_ref(x, w1, w2, outsize)
    assert out.shape == (B, C, outsize, outsize), out.shape
    assert jnp.allclose(out, ref, atol=1e-5, rtol=1e-5), (
        float(jnp.max(jnp.abs(out - ref)))
    )
    print("KERNEL_OK")
</pallas_src>

<mosaic_0001>
module attributes {stable_mosaic.version = 11 : i64} {
  func.func @_channel_attention_kernel(%arg0: i32, %arg1: memref<1x128x64xf32, #tpu.memory_space<vmem>>, %arg2: memref<128x32xf32, #tpu.memory_space<vmem>>, %arg3: memref<32x128xf32, #tpu.memory_space<vmem>>, %arg4: memref<1x1x128xf32, #tpu.memory_space<vmem>>) attributes {dimension_semantics = [#tpu.dimension_semantics<parallel>], iteration_bounds = array<i64: 2>, scalar_prefetch = 0 : i64, scratch_operands = 0 : i64, tpu.core_type = #tpu.core_type<tc>, window_params = [{transform_indices = @transform_0, window_bounds = array<i64: 1, 128, 64>}, {pipeline_mode = #tpu.pipeline_mode<synchronous>, transform_indices = @transform_1, window_bounds = array<i64: 128, 32>}, {pipeline_mode = #tpu.pipeline_mode<synchronous>, transform_indices = @transform_2, window_bounds = array<i64: 32, 128>}, {transform_indices = @transform_3, window_bounds = array<i64: 1, 1, 128>}]} {
    %c0 = arith.constant 0 : index
    %c0_0 = arith.constant 0 : index
    %c0_1 = arith.constant 0 : index
    %0 = vector.load %arg1[%c0, %c0_0, %c0_1] : memref<1x128x64xf32, #tpu.memory_space<vmem>>, vector<1x128x64xf32>
    %cst = arith.constant dense<0.000000e+00> : vector<1x128xf32>
    %1 = vector.multi_reduction <add>, %0, %cst [2] : vector<1x128x64xf32> to vector<1x128xf32>
    %cst_2 = arith.constant 1.562500e-02 : f32
    %2 = vector.broadcast %cst_2 : f32 to vector<1x128xf32>
    %3 = arith.mulf %1, %2 : vector<1x128xf32>
    %cst_3 = arith.constant dense<0xFF800000> : vector<1x128xf32>
    %4 = vector.multi_reduction <maximumf>, %0, %cst_3 [2] : vector<1x128x64xf32> to vector<1x128xf32>
    %5 = tpu.concatenate %3, %4 in 0 : vector<1x128xf32>, vector<1x128xf32> -> vector<2x128xf32>
    %c0_4 = arith.constant 0 : index
    %c0_5 = arith.constant 0 : index
    %6 = vector.load %arg2[%c0_4, %c0_5] : memref<128x32xf32, #tpu.memory_space<vmem>>, vector<128x32xf32>
    %cst_6 = arith.constant dense<0.000000e+00> : vector<2x32xf32>
    %7 = tpu.matmul %5, %6, %cst_6 {dimension_numbers = #tpu.dot_dimension_numbers<[1], [0], [0], [1], [0, 0, 1, 1], [], []>} : vector<2x128xf32>, vector<128x32xf32>, vector<2x32xf32> -> vector<2x32xf32>
    %cst_7 = arith.constant 0.000000e+00 : f32
    %8 = vector.broadcast %cst_7 : f32 to vector<2x32xf32>
    %9 = arith.maximumf %7, %8 : vector<2x32xf32>
    %c0_8 = arith.constant 0 : index
    %c0_9 = arith.constant 0 : index
    %10 = vector.load %arg3[%c0_8, %c0_9] : memref<32x128xf32, #tpu.memory_space<vmem>>, vector<32x128xf32>
    %cst_10 = arith.constant dense<0.000000e+00> : vector<2x128xf32>
    %11 = tpu.matmul %9, %10, %cst_10 {dimension_numbers = #tpu.dot_dimension_numbers<[1], [0], [0], [1], [0, 0, 1, 1], [], []>} : vector<2x32xf32>, vector<32x128xf32>, vector<2x128xf32> -> vector<2x128xf32>
    %12 = vector.extract_strided_slice %11 {offsets = [0, 0], sizes = [1, 128], strides = [1, 1]} : vector<2x128xf32> to vector<1x128xf32>
    %13 = vector.extract_strided_slice %11 {offsets = [1, 0], sizes = [1, 128], strides = [1, 1]} : vector<2x128xf32> to vector<1x128xf32>
    %14 = arith.addf %12, %13 : vector<1x128xf32>
    %15 = arith.negf %14 : vector<1x128xf32>
    %16 = math.exp %15 : vector<1x128xf32>
    %cst_11 = arith.constant 1.000000e+00 : f32
    %17 = vector.broadcast %cst_11 : f32 to vector<1x128xf32>
    %18 = arith.addf %17, %16 : vector<1x128xf32>
    %19 = arith.divf %17, %18 : vector<1x128xf32>
    %20 = vector.shape_cast %19 : vector<1x128xf32> to vector<1x1x128xf32>
    %c0_12 = arith.constant 0 : index
    %c0_13 = arith.constant 0 : index
    %c0_14 = arith.constant 0 : index
    %21 = vector.load %arg4[%c0_12, %c0_13, %c0_14] : memref<1x1x128xf32, #tpu.memory_space<vmem>>, vector<1x1x128xf32>
    tpu.vector_store %arg4[%c0_12, %c0_13, %c0_14], %20 {strides = array<i32>} : memref<1x1x128xf32, #tpu.memory_space<vmem>>, vector<1x1x128xf32>,
    return
  }
  func.func @transform_0(%arg0: i32) -> (i32, i32, i32) {
    %c0_i32 = arith.constant 0 : i32
    %c0_i32_0 = arith.constant 0 : i32
    %c0_i32_1 = arith.constant 0 : i32
    return %arg0, %c0_i32, %c0_i32_0 : i32, i32, i32
  }
  func.func @transform_1(%arg0: i32) -> (i32, i32) {
    %c0_i32 = arith.constant 0 : i32
    %c0_i32_0 = arith.constant 0 : i32
    %c0_i32_1 = arith.constant 0 : i32
    return %c0_i32, %c0_i32_0 : i32, i32
  }
  func.func @transform_2(%arg0: i32) -> (i32, i32) {
    %c0_i32 = arith.constant 0 : i32
    %c0_i32_0 = arith.constant 0 : i32
    %c0_i32_1 = arith.constant 0 : i32
    return %c0_i32, %c0_i32_0 : i32, i32
  }
  func.func @transform_3(%arg0: i32) -> (i32, i32, i32) {
    %c0_i32 = arith.constant 0 : i32
    %c0_i32_0 = arith.constant 0 : i32
    %c0_i32_1 = arith.constant 0 : i32
    return %arg0, %c0_i32, %c0_i32_0 : i32, i32, i32
  }
}

</mosaic_0001>

<llo_original>
// kernel: tpu_custom_call.1
$region0: #{tpu_custom_call.1}
  #allocation0 [shape = 'u32[]', space=smem, size = 0x4, offset = 0x4, fixed_abs, tag = 'smem constant byte address 0x4 - core index']
  #allocation1 [shape = 'u32[72,128]{1,0:T(1,128)}', space=vmem, size = 0x9000, scoped, tag = 'internal scratch']
  %s0 = inlined_call_operand.vmem [shape: f32[2,128,64], index: 0, kind: input, shape index: {}]
  %s1 = inlined_call_operand.vmem [shape: f32[128,32], index: 1, kind: input, shape index: {}]
  %s2 = inlined_call_operand.vmem [shape: f32[32,128], index: 2, kind: input, shape index: {}]
  %s3 = inlined_call_operand.hbm [shape: f32[2,1,128], index: 3, kind: output, shape index: {}]
  %s4 = sld [smem:[#allocation0]]
  $region45: #{tpu_custom_call.1} parent=0
    _
  %s6 = ssub.s32 1, %s4
  %s7 = scalar_select 0, %s6, %s4
  $region1: #{tpu_custom_call.1} parent=0
    #allocation2 [shape = 'u8[1024]{0}', space=vmem, size = 0x400, scoped, tag = 'output window, operand 0']
    #allocation3 [shape = 's32[2]{0}', space=sflag, size = 0x8, scoped, tag = 'scoped memory for tpu_custom_call.1']
    %8 = vsyncpa [#allocation3], 0
    %s9 = scalar_lea.sflag [#allocation3], 1
    %10 = vsyncpa %s9, 0
    loop: start=0, step=1, limit=4
    $region2: #{tpu_custom_call.1} parent=1 // loop_pre_header
      _
    $region3: #{tpu_custom_call.1} parent=1 // loop_header
      %s12 = sphi 0, %s16
      %p13 = scmp.ge.s32.totalorder %s12, 4
      %s22 = sphi 0, %s24
      %s25 = sphi 0, %s22
      %s26 = sphi 0, %s25
      %s42 = sphi 0, %s26
      %s46 = sphi 0, %s46
      %s48 = sphi 0, %s46
      %s49 = sphi 0, %s48
      %s63 = sphi 0, %s49
      %s67 = sphi 0, %s67
      %s69 = sphi 0, %s67
      %s70 = sphi 0, %s69
      %s84 = sphi 0, %s70
      %s90 = sphi 0, %s92
      %s93 = sphi 0, %s90
      %s94 = sphi 0, %s93
      %s110 = sphi 0, %s94
    $region4: #{tpu_custom_call.1} parent=1 // loop_header_branch
      %15 = sbr.rel (%p13) target = $region8
    $region5: #{tpu_custom_call.1} parent=1 // loop_body
      %s17 = ssub.s32 %s12, 1
      %s18 = ssub.s32 %s12, 2
      %s19 = sadd.s32 %s12, 1
      %s20 = ssub.s32 %s12, %s19
      %p21 = scmp.eq.s32.totalorder %s20, 0
      %s23 = sadd.s32 %s22, 1
      %s24 = scalar_select %p21, %s22, %s23
      %p27 = pneg %p21
      %p28 = scmp.eq.s32.totalorder %s12, 1
      %p29 = por %p27, %p28
      %p30 = scmp.ne.s32.totalorder %s22, %s25
      %p31 = scmp.eq.s32.totalorder %s12, 0
      %p32 = por %p30, %p31
      %p33 = scmp.ne.s32.totalorder %s22, %s25
      %p34 = scmp.eq.s32.totalorder %s17, 1
      %p35 = por %p33, %p34
      %p36 = scmp.ne.s32.totalorder %s25, %s26
      %p37 = scmp.eq.s32.totalorder %s17, 0
      %p38 = por %p36, %p37
      %p39 = scmp.ne.s32.totalorder %s25, %s26
      %p40 = scmp.eq.s32.totalorder %s18, 1
      %p41 = por %p39, %p40
      %p43 = scmp.ne.s32.totalorder %s26, %s42
      %p44 = scmp.eq.s32.totalorder %s18, 0
      %p45 = por %p43, %p44
      %s47 = sadd.s32 %s46, 1
      %p50 = scmp.eq.s32.totalorder %s12, 1
      %p51 = scmp.ne.s32.totalorder %s46, %s48
      %p52 = scmp.eq.s32.totalorder %s12, 0
      %p53 = por %p51, %p52
      %p54 = scmp.ne.s32.totalorder %s46, %s48
      %p55 = scmp.eq.s32.totalorder %s17, 1
      %p56 = por %p54, %p55
      %p57 = scmp.ne.s32.totalorder %s48, %s49
      %p58 = scmp.eq.s32.totalorder %s17, 0
      %p59 = por %p57, %p58
      %p60 = scmp.ne.s32.totalorder %s48, %s49
      %p61 = scmp.eq.s32.totalorder %s18, 1
      %p62 = por %p60, %p61
      %p64 = scmp.ne.s32.totalorder %s49, %s63
      %p65 = scmp.eq.s32.totalorder %s18, 0
      %p66 = por %p64, %p65
      %s68 = sadd.s32 %s67, 1
      %p71 = scmp.eq.s32.totalorder %s12, 1
      %p72 = scmp.ne.s32.totalorder %s67, %s69
      %p73 = scmp.eq.s32.totalorder %s12, 0
      %p74 = por %p72, %p73
      %p75 = scmp.ne.s32.totalorder %s67, %s69
      %p76 = scmp.eq.s32.totalorder %s17, 1
      %p77 = por %p75, %p76
      %p78 = scmp.ne.s32.totalorder %s69, %s70
      %p79 = scmp.eq.s32.totalorder %s17, 0
      %p80 = por %p78, %p79
      %p81 = scmp.ne.s32.totalorder %s69, %s70
      %p82 = scmp.eq.s32.totalorder %s18, 1
      %p83 = por %p81, %p82
      %p85 = scmp.ne.s32.totalorder %s70, %s84
      %p86 = scmp.eq.s32.totalorder %s18, 0
      %p87 = por %p85, %p86
      %s88 = ssub.s32 %s12, %s19
      %p89 = scmp.eq.s32.totalorder %s88, 0
      %s91 = sadd.s32 %s90, 1
      %s92 = scalar_select %p89, %s90, %s91
      %p95 = pneg %p89
      %p96 = scmp.eq.s32.totalorder %s12, 1
      %p97 = por %p95, %p96
      %p98 = scmp.ne.s32.totalorder %s90, %s93
      %p99 = scmp.eq.s32.totalorder %s12, 0
      %p100 = por %p98, %p99
      %p101 = scmp.ne.s32.totalorder %s90, %s93
      %p102 = scmp.eq.s32.totalorder %s17, 1
      %p103 = por %p101, %p102
      %p104 = scmp.ne.s32.totalorder %s93, %s94
      %p105 = scmp.eq.s32.totalorder %s17, 0
      %p106 = por %p104, %p105
      %p107 = scmp.ne.s32.totalorder %s93, %s94
      %p108 = scmp.eq.s32.totalorder %s18, 1
      %p109 = por %p107, %p108
      %p111 = scmp.ne.s32.totalorder %s94, %s110
      %p112 = scmp.eq.s32.totalorder %s18, 0
      %p113 = por %p111, %p112
      %p114 = scmp.le.s32.totalorder 1, %s12
      %p115 = scmp.lt.s32.totalorder %s12, 3
      %p116 = pnand %p114, %p115
      %p117 = pneg %p116
      // Predicated region
      $region9: #{tpu_custom_call.1} parent=5 // pred_check
        _
      $region10: #{tpu_custom_call.1} parent=5 // pred_check_branch
        %119 = sbr.rel (%p116) target = $region12
      $region11: #{tpu_custom_call.1} parent=5 // pred_region
        %s120 = ssub.s32 %s12, 1
        // Predicated region
        $region13: #{tpu_custom_call.1} parent=11 // pred_check
          %p121 = pneg %p59
        $region14: #{tpu_custom_call.1} parent=11 // pred_check_branch
          %123 = sbr.rel (%p121) target = $region16
        $region15: #{tpu_custom_call.1} parent=11 // pred_region
          _
        $region16: #{tpu_custom_call.1} parent=11 // pred_fallthru
          _
        // Predicated region
        $region17: #{tpu_custom_call.1} parent=11 // pred_check
          %p124 = pneg %p80
        $region18: #{tpu_custom_call.1} parent=11 // pred_check_branch
          %126 = sbr.rel (%p124) target = $region20
        $region19: #{tpu_custom_call.1} parent=11 // pred_region
          _
        $region20: #{tpu_custom_call.1} parent=11 // pred_fallthru
          _
      $region12: #{tpu_custom_call.1} parent=5 // pred_fallthru
        _
      %p127 = scmp.lt.s32.totalorder %s12, 2
      // Predicated region
      $region21: #{tpu_custom_call.1} parent=5 // pred_check
        %p128 = pneg %p127
      $region22: #{tpu_custom_call.1} parent=5 // pred_check_branch
        %130 = sbr.rel (%p128) target = $region24
      $region23: #{tpu_custom_call.1} parent=5 // pred_region
        // Predicated region
        $region25: #{tpu_custom_call.1} parent=23 // pred_check
          %p131 = pneg %p32
        $region26: #{tpu_custom_call.1} parent=23 // pred_check_branch
          %133 = sbr.rel (%p131) target = $region28
        $region27: #{tpu_custom_call.1} parent=23 // pred_region
          %p134 = scmp.lt.s32.totalorder %s12, 1
          %s135 = scalar_select %p134, %s12, 1
          %s136 = smul.addr %s135, 16
          %s137 = smul.addr %s136, 8
          %s138 = scalar_lea.vmem %s0, %s137
        $region28: #{tpu_custom_call.1} parent=23 // pred_fallthru
          _
      $region24: #{tpu_custom_call.1} parent=5 // pred_fallthru
        _
      %p139 = scmp.le.s32.totalorder 1, %s12
      %p140 = scmp.lt.s32.totalorder %s12, 3
      %p141 = pnand %p139, %p140
      %p142 = pneg %p141
      // Predicated region
      $region29: #{tpu_custom_call.1} parent=5 // pred_check
        _
      $region30: #{tpu_custom_call.1} parent=5 // pred_check_branch
        %144 = sbr.rel (%p141) target = $region32
      $region31: #{tpu_custom_call.1} parent=5 // pred_region
        %s145 = ssub.s32 %s12, 1
        %p146 = scmp.lt.s32.totalorder %s17, 1
        %s147 = scalar_select %p146, %s17, 1
        %s148 = smul.addr %s147, 16
        %s149 = smul.addr %s148, 8
        %s150 = scalar_lea.vmem %s0, %s149
        %p151 = pneg %p38
        %p152 = pneg %p35
        %p153 = pneg %p59
        %p154 = pneg %p56
        %p155 = pneg %p80
        %p156 = pneg %p77
        %p157 = pneg %p106
        %p158 = pneg %p103
        %s159 = sand.u32 %s93, 1
        %s160 = scalar_lea.sflag [#allocation3], %s159
        %s161 = sand.u32 %s93, 1
        %s162 = scalar_lea.vmem [#allocation2], %s161
        %p163 = scmp.lt.s32.totalorder %s17, 1
        %s164 = scalar_select %p163, %s17, 1
        %s165 = smul.addr %s164, 16
        %s166 = smul.addr %s165, 8
        %s167 = scalar_lea.vmem %s0, %s166
        %v168 = vld [vmem:[%s167] sm:$0xff]
        %v169 = vld [vmem:[%s167 + $0x8] sm:$0xff]
        %v170 = vld [vmem:[%s167 + $0x10] sm:$0xff]
        %v171 = vld [vmem:[%s167 + $0x18] sm:$0xff]
        %v172 = vld [vmem:[%s167 + $0x20] sm:$0xff]
        %v173 = vld [vmem:[%s167 + $0x28] sm:$0xff]
        %v174 = vld [vmem:[%s167 + $0x30] sm:$0xff]
        %v175 = vld [vmem:[%s167 + $0x38] sm:$0xff]
        %v176 = vld [vmem:[%s167 + $0x40] sm:$0xff]
        %v177 = vld [vmem:[%s167 + $0x48] sm:$0xff]
        %v178 = vld [vmem:[%s167 + $0x50] sm:$0xff]
        %v179 = vld [vmem:[%s167 + $0x58] sm:$0xff]
        %v180 = vld [vmem:[%s167 + $0x60] sm:$0xff]
        %v181 = vld [vmem:[%s167 + $0x68] sm:$0xff]
        %v182 = vld [vmem:[%s167 + $0x70] sm:$0xff]
        %v183 = vld [vmem:[%s167 + $0x78] sm:$0xff]
        %vm184 = vcmask 523264
        %v185 = vsel %vm184, %v168, 0.0
        %186 = vadd.xlane.f32.xlu0 %v185
        %v187 = vpop.xlane.xlu0 %186
        %v188 = vsel %vm184, %v169, 0.0
        %189 = vadd.xlane.f32.xlu0 %v188
        %v190 = vpop.xlane.xlu0 %189
        %v191 = vsel %vm184, %v170, 0.0
        %192 = vadd.xlane.f32.xlu0 %v191
        %v193 = vpop.xlane.xlu0 %192
        %v194 = vsel %vm184, %v171, 0.0
        %195 = vadd.xlane.f32.xlu0 %v194
        %v196 = vpop.xlane.xlu0 %195
        %v197 = vsel %vm184, %v172, 0.0
        %198 = vadd.xlane.f32.xlu0 %v197
        %v199 = vpop.xlane.xlu0 %198
        %v200 = vsel %vm184, %v173, 0.0
        %201 = vadd.xlane.f32.xlu0 %v200
        %v202 = vpop.xlane.xlu0 %201
        %v203 = vsel %vm184, %v174, 0.0
        %204 = vadd.xlane.f32.xlu0 %v203
        %v205 = vpop.xlane.xlu0 %204
        %v206 = vsel %vm184, %v175, 0.0
        %207 = vadd.xlane.f32.xlu0 %v206
        %v208 = vpop.xlane.xlu0 %207
        %v209 = vsel %vm184, %v176, 0.0
        %210 = vadd.xlane.f32.xlu0 %v209
        %v211 = vpop.xlane.xlu0 %210
        %v212 = vsel %vm184, %v177, 0.0
        %213 = vadd.xlane.f32.xlu0 %v212
        %v214 = vpop.xlane.xlu0 %213
        %v215 = vsel %vm184, %v178, 0.0
        %216 = vadd.xlane.f32.xlu0 %v215
        %v217 = vpop.xlane.xlu0 %216
        %v218 = vsel %vm184, %v179, 0.0
        %219 = vadd.xlane.f32.xlu0 %v218
        %v220 = vpop.xlane.xlu0 %219
        %v221 = vsel %vm184, %v180, 0.0
        %222 = vadd.xlane.f32.xlu0 %v221
        %v223 = vpop.xlane.xlu0 %222
        %v224 = vsel %vm184, %v181, 0.0
        %225 = vadd.xlane.f32.xlu0 %v224
        %v226 = vpop.xlane.xlu0 %225
        %v227 = vsel %vm184, %v182, 0.0
        %228 = vadd.xlane.f32.xlu0 %v227
        %v229 = vpop.xlane.xlu0 %228
        %v230 = vsel %vm184, %v183, 0.0
        %231 = vadd.xlane.f32.xlu0 %v230
        %v232 = vpop.xlane.xlu0 %231
        %v233 = vmul.f32 %v187, 0.015625
        %v234 = vmul.f32 %v190, 0.015625
        %v235 = vmul.f32 %v193, 0.015625
        %v236 = vmul.f32 %v196, 0.015625
        %v237 = vmul.f32 %v199, 0.015625
        %v238 = vmul.f32 %v202, 0.015625
        %v239 = vmul.f32 %v205, 0.015625
        %v240 = vmul.f32 %v208, 0.015625
        %v241 = vmul.f32 %v211, 0.015625
        %v242 = vmul.f32 %v214, 0.015625
        %v243 = vmul.f32 %v217, 0.015625
        %v244 = vmul.f32 %v220, 0.015625
        %v245 = vmul.f32 %v223, 0.015625
        %v246 = vmul.f32 %v226, 0.015625
        %v247 = vmul.f32 %v229, 0.015625
        %v248 = vmul.f32 %v232, 0.015625
        %v249 = vsel %vm184, %v168, -inf
        %250 = vmax.xlane.f32.xlu0 %v249
        %v251 = vpop.xlane.xlu0 %250
        %v252 = vsel %vm184, %v169, -inf
        %253 = vmax.xlane.f32.xlu0 %v252
        %v254 = vpop.xlane.xlu0 %253
        %v255 = vsel %vm184, %v170, -inf
        %256 = vmax.xlane.f32.xlu0 %v255
        %v257 = vpop.xlane.xlu0 %256
        %v258 = vsel %vm184, %v171, -inf
        %259 = vmax.xlane.f32.xlu0 %v258
        %v260 = vpop.xlane.xlu0 %259
        %v261 = vsel %vm184, %v172, -inf
        %262 = vmax.xlane.f32.xlu0 %v261
        %v263 = vpop.xlane.xlu0 %262
        %v264 = vsel %vm184, %v173, -inf
        %265 = vmax.xlane.f32.xlu0 %v264
        %v266 = vpop.xlane.xlu0 %265
        %v267 = vsel %vm184, %v174, -inf
        %268 = vmax.xlane.f32.xlu0 %v267
        %v269 = vpop.xlane.xlu0 %268
        %v270 = vsel %vm184, %v175, -inf
        %271 = vmax.xlane.f32.xlu0 %v270
        %v272 = vpop.xlane.xlu0 %271
        %v273 = vsel %vm184, %v176, -inf
        %274 = vmax.xlane.f32.xlu0 %v273
        %v275 = vpop.xlane.xlu0 %274
        %v276 = vsel %vm184, %v177, -inf
        %277 = vmax.xlane.f32.xlu0 %v276
        %v278 = vpop.xlane.xlu0 %277
        %v279 = vsel %vm184, %v178, -inf
        %280 = vmax.xlane.f32.xlu0 %v279
        %v281 = vpop.xlane.xlu0 %280
        %v282 = vsel %vm184, %v179, -inf
        %283 = vmax.xlane.f32.xlu0 %v282
        %v284 = vpop.xlane.xlu0 %283
        %v285 = vsel %vm184, %v180, -inf
        %286 = vmax.xlane.f32.xlu0 %v285
        %v287 = vpop.xlane.xlu0 %286
        %v288 = vsel %vm184, %v181, -inf
        %289 = vmax.xlane.f32.xlu0 %v288
        %v290 = vpop.xlane.xlu0 %289
        %v291 = vsel %vm184, %v182, -inf
        %292 = vmax.xlane.f32.xlu0 %v291
        %v293 = vpop.xlane.xlu0 %292
        %v294 = vsel %vm184, %v183, -inf
        %295 = vmax.xlane.f32.xlu0 %v294
        %v296 = vpop.xlane.xlu0 %295
        %v313 = vlaneseq
        %v314 = vand.u32 %v313, 127
        %v315 = vperm.slane %v233, %v314
        %v316 = vadd.s32 %v314, 4294967288
        %v317 = vperm.slane %v234, %v316
        %vm318 = vcmask 130112
        %v319 = vsel %vm318, %v317, %v315
        %v320 = vadd.s32 %v314, 4294967280
        %v321 = vperm.slane %v235, %v320
        %vm322 = vcmask 195712
        %v323 = vsel %vm322, %v321, %v319
        %v324 = vadd.s32 %v314, 4294967272
        %v325 = vperm.slane %v236, %v324
        %vm326 = vcmask 261312
        %v327 = vsel %vm326, %v325, %v323
        %v328 = vadd.s32 %v314, 4294967264
        %v329 = vperm.slane %v237, %v328
        %vm330 = vcmask 326912
        %v331 = vsel %vm330, %v329, %v327
        %v332 = vadd.s32 %v314, 4294967256
        %v333 = vperm.slane %v238, %v332
        %vm334 = vcmask 392512
        %v335 = vsel %vm334, %v333, %v331
        %v336 = vadd.s32 %v314, 4294967248
        %v337 = vperm.slane %v239, %v336
        %vm338 = vcmask 458112
        %v339 = vsel %vm338, %v337, %v335
        %v340 = vadd.s32 %v314, 4294967240
        %v341 = vperm.slane %v240, %v340
        %vm342 = vcmask 523712
        %v343 = vsel %vm342, %v341, %v339
        %v344 = vadd.s32 %v314, 4294967232
        %v345 = vperm.slane %v241, %v344
        %vm346 = vcmask 589312
        %v347 = vsel %vm346, %v345, %v343
        %v348 = vadd.s32 %v314, 4294967224
        %v349 = vperm.slane %v242, %v348
        %vm350 = vcmask 654912
        %v351 = vsel %vm350, %v349, %v347
        %v352 = vadd.s32 %v314, 4294967216
        %v353 = vperm.slane %v243, %v352
        %vm354 = vcmask 720512
        %v355 = vsel %vm354, %v353, %v351
        %v356 = vadd.s32 %v314, 4294967208
        %v357 = vperm.slane %v244, %v356
        %vm358 = vcmask 786112
        %v359 = vsel %vm358, %v357, %v355
        %v360 = vadd.s32 %v314, 4294967200
        %v361 = vperm.slane %v245, %v360
        %vm362 = vcmask 851712
        %v363 = vsel %vm362, %v361, %v359
        %v364 = vadd.s32 %v314, 4294967192
        %v365 = vperm.slane %v246, %v364
        %vm366 = vcmask 917312
        %v367 = vsel %vm366, %v365, %v363
        %v368 = vadd.s32 %v314, 4294967184
        %v369 = vperm.slane %v247, %v368
        %vm370 = vcmask 982912
        %v371 = vsel %vm370, %v369, %v367
        %v372 = vadd.s32 %v314, 4294967176
        %v373 = vperm.slane %v248, %v372
        %vm374 = vcmask 1048512
        %v375 = vsel %vm374, %v373, %v371
        %v393 = vperm.slane %v251, %v314
        %v394 = vperm.slane %v254, %v316
        %v395 = vsel %vm318, %v394, %v393
        %v396 = vperm.slane %v257, %v320
        %v397 = vsel %vm322, %v396, %v395
        %v398 = vperm.slane %v260, %v324
        %v399 = vsel %vm326, %v398, %v397
        %v400 = vperm.slane %v263, %v328
        %v401 = vsel %vm330, %v400, %v399
        %v402 = vperm.slane %v266, %v332
        %v403 = vsel %vm334, %v402, %v401
        %v404 = vperm.slane %v269, %v336
        %v405 = vsel %vm338, %v404, %v403
        %v406 = vperm.slane %v272, %v340
        %v407 = vsel %vm342, %v406, %v405
        %v408 = vperm.slane %v275, %v344
        %v409 = vsel %vm346, %v408, %v407
        %v410 = vperm.slane %v278, %v348
        %v411 = vsel %vm350, %v410, %v409
        %v412 = vperm.slane %v281, %v352
        %v413 = vsel %vm354, %v412, %v411
        %v414 = vperm.slane %v284, %v356
        %v415 = vsel %vm358, %v414, %v413
        %v416 = vperm.slane %v287, %v360
        %v417 = vsel %vm362, %v416, %v415
        %v418 = vperm.slane %v290, %v364
        %v419 = vsel %vm366, %v418, %v417
        %v420 = vperm.slane %v293, %v368
        %v421 = vsel %vm370, %v420, %v419
        %v422 = vperm.slane %v296, %v372
        %v423 = vsel %vm374, %v422, %v421
        %vm425 = vcmask 1040384
        %v426 = vsel %vm425, %v375, %v423
        %v427 = vld [vmem:[%s1] sm:$0xff]
        %v428 = vld [vmem:[%s1 + $0x8] sm:$0xff]
        %v429 = vld [vmem:[%s1 + $0x10] sm:$0xff]
        %v430 = vld [vmem:[%s1 + $0x18] sm:$0xff]
        %v431 = vld [vmem:[%s1 + $0x20] sm:$0xff]
        %v432 = vld [vmem:[%s1 + $0x28] sm:$0xff]
        %v433 = vld [vmem:[%s1 + $0x30] sm:$0xff]
        %v434 = vld [vmem:[%s1 + $0x38] sm:$0xff]
        %v435 = vld [vmem:[%s1 + $0x40] sm:$0xff]
        %v436 = vld [vmem:[%s1 + $0x48] sm:$0xff]
        %v437 = vld [vmem:[%s1 + $0x50] sm:$0xff]
        %v438 = vld [vmem:[%s1 + $0x58] sm:$0xff]
        %v439 = vld [vmem:[%s1 + $0x60] sm:$0xff]
        %v440 = vld [vmem:[%s1 + $0x68] sm:$0xff]
        %v441 = vld [vmem:[%s1 + $0x70] sm:$0xff]
        %v442 = vld [vmem:[%s1 + $0x78] sm:$0xff]
        %443 = vmatpush.msra.mxu0 %v442
        %444 = vmatpush.msra.mxu0 %v441
        %445 = vmatpush.msra.mxu0 %v440
        %446 = vmatpush.msra.mxu0 %v439
        %447 = vmatpush.msra.mxu0 %v438
        %448 = vmatpush.msra.mxu0 %v437
        %449 = vmatpush.msra.mxu0 %v436
        %450 = vmatpush.msra.mxu0 %v435
        %451 = vmatpush.msra.mxu0 %v434
        %452 = vmatpush.msra.mxu0 %v433
        %453 = vmatpush.msra.mxu0 %v432
        %454 = vmatpush.msra.mxu0 %v431
        %455 = vmatpush.msra.mxu0 %v430
        %456 = vmatpush.msra.mxu0 %v429
        %457 = vmatpush.msra.mxu0 %v428
        %458 = vmatpush.msra.mxu0 %v427
        %459 = vmatmul.f32.gmra.mxu0 %v426
        %v460 = vpop.f32.mrf.mxu0
        %v461 = vadd.f32 0.0, %v460
        %462 = vdwg.mxu0
        %v463 = vmax.f32 %v461, 0.0
        %v464 = vld [vmem:[%s2] sm:$0xff]
        %v465 = vld [vmem:[%s2 + $0x8] sm:$0xff]
        %v466 = vld [vmem:[%s2 + $0x10] sm:$0xff]
        %v467 = vld [vmem:[%s2 + $0x18] sm:$0xff]
        %vm468 = vcmask 261120
        %v470 = vsel %vm468, %v463, 0
        %472 = vmatpush.msra.mxu0 0.0
        %473 = vmatpush.msra.mxu0 0.0
        %474 = vmatpush.msra.mxu0 0.0
        %475 = vmatpush.msra.mxu0 0.0
        %476 = vmatpush.msra.mxu0 0.0
        %477 = vmatpush.msra.mxu0 0.0
        %478 = vmatpush.msra.mxu0 0.0
        %479 = vmatpush.msra.mxu0 0.0
        %480 = vmatpush.msra.mxu0 0.0
        %481 = vmatpush.msra.mxu0 0.0
        %482 = vmatpush.msra.mxu0 0.0
        %483 = vmatpush.msra.mxu0 0.0
        %484 = vmatpush.msra.mxu0 %v467
        %485 = vmatpush.msra.mxu0 %v466
        %486 = vmatpush.msra.mxu0 %v465
        %487 = vmatpush.msra.mxu0 %v464
        %488 = vmatmul.f32.gmra.mxu0 %v470
        %v489 = vpop.f32.mrf.mxu0
        %v490 = vadd.f32 0.0, %v489
        %491 = vdwg.mxu0
        %v493 = vrot.slane %v490, 1
        %v495 = vadd.f32 %v490, %v493
        %v496 = vxor.u32 %v495, 2147483648
        %v497 = vmul.f32 %v496, 1.442695
        %v498 = vpow.pop %v497
        %v499 = vadd.f32 %v498, 1.0
        %v500 = vrcp.pop %v499
        %v501 = vmul.f32 %v499, %v500
        %v502 = vsub.f32 1.0, %v501
        %v503 = vmul.f32 %v500, %v502
        %v504 = vadd.f32 %v500, %v503
        %vm505 = vweird.f32 %v499
        %vm506 = vweird.f32 %v500
        %vm507 = vmor %vm505, %vm506
        %v508 = vsel %vm507, %v500, %v504
        %v509 = vand.u32 2147483647, %v499
        %vm510 = vcmp.eq.f32.partialorder %v509, 8.507059e+37
        %v511 = vand.u32 %v499, 2147483648
        %v512 = vor.u32 1.1754944e-38, %v511
        %v513 = vsel %vm510, %v512, %v508
        %v514 = vmul.f32 1.0, %v513
        %515 = vst [vmem:[%s162] sm:$0x1] %v514
        %s516 = sand.u32 %s93, 1
        %s517 = scalar_lea.sflag [#allocation3], %s516
        %s518 = sand.u32 %s93, 1
        %s519 = scalar_lea.vmem [#allocation2], %s518
        // Predicated region
        $region33: #{tpu_custom_call.1} parent=31 // pred_check
          %p520 = pneg %p103
        $region34: #{tpu_custom_call.1} parent=31 // pred_check_branch
          %522 = sbr.rel (%p520) target = $region36
        $region35: #{tpu_custom_call.1} parent=31 // pred_region
          %524 = vsyncadd %s517, 0
          %s525 = scalar_lea.hbm %s3, %s17
          %s527 = sshll.u32 %s519, 4
          %s528 = int_to_ptr.vmem [resolvable:$true] %s527
          %s529 = sshll.u32 %s525, 4
          %s530 = int_to_ptr.hbm [resolvable:$true] %s529
          %532 = dma.vmem_to_hbm [thread:$0]  %s528, 16, %s530, %s517
        $region36: #{tpu_custom_call.1} parent=31 // pred_fallthru
          _
      $region32: #{tpu_custom_call.1} parent=5 // pred_fallthru
        _
      %p533 = scmp.le.s32.totalorder 2, %s12
      // Predicated region
      $region37: #{tpu_custom_call.1} parent=5 // pred_check
        %p534 = pneg %p533
      $region38: #{tpu_custom_call.1} parent=5 // pred_check_branch
        %536 = sbr.rel (%p534) target = $region40
      $region39: #{tpu_custom_call.1} parent=5 // pred_region
        %s537 = ssub.s32 %s12, 2
        // Predicated region
        $region41: #{tpu_custom_call.1} parent=39 // pred_check
          %p538 = pneg %p109
        $region42: #{tpu_custom_call.1} parent=39 // pred_check_branch
          %540 = sbr.rel (%p538) target = $region44
        $region43: #{tpu_custom_call.1} parent=39 // pred_region
          %s541 = sand.u32 %s94, 1
          %s542 = scalar_lea.sflag [#allocation3], %s541
          %s543 = sand.u32 %s94, 1
          %s544 = scalar_lea.vmem [#allocation2], %s543
          %546 = dma.done %s542, 16
        $region44: #{tpu_custom_call.1} parent=39 // pred_fallthru
          _
      $region40: #{tpu_custom_call.1} parent=5 // pred_fallthru
        _
    $region6: #{tpu_custom_call.1} parent=1 // loop_footer
      %s16 = sadd.s32 1, %s12
    $region7: #{tpu_custom_call.1} parent=1 // loop_footer_branch
      %11 = sbr.rel target = $region3
    $region8: #{tpu_custom_call.1} parent=1 // loop_exit
      _
    %547 = vsyncpa [#allocation3], 1
    %s548 = scalar_lea.sflag [#allocation3], 1
    %549 = vsyncpa %s548, 1

</llo_original>
